<compile_context>
chip_gen: v7x
topology: tpu7x:2x2x1
jax: 0.10.0
libtpu: 0.0.40
codegen_flags: <defaults>
</compile_context>

<pallas_src>
import jax
import jax.numpy as jnp
from jax.experimental import pallas as pl
from jax.experimental.pallas import tpu as pltpu

EPS = 1e-5


def _make_kernel(B, H, W, C):
    R = B * H          # rows of the lane-dense slab
    L = W * C          # lane-dense column count
    N = B * H * W      # BatchNorm sample count per channel

    def kernel(x_ref, w1_ref, w2_ref, g1_ref, b1_ref, g2_ref, b2_ref,
               a_ref, mprev_ref, mnext_ref, out_ref, preact_ref):
        x = x_ref[...]                 # (R, L)  f32 input slab (also residual)
        a = a_ref[...]                 # (L, L)  f32 channel-collapse matrix
        m_prev = mprev_ref[...]        # (R, 1)  1.0 where reading row h-1 is valid
        m_next = mnext_ref[...]        # (R, 1)  1.0 where reading row h+1 is valid

        def conv3x3(src_f32, w_ref):
            """3x3 conv as 3 banded matmuls; kh taps via sublane roll + mask."""
            acc = None
            for kh in range(3):
                dh = kh - 1
                if dh == 0:
                    tap = src_f32
                else:
                    rolled = pltpu.roll(src_f32, shift=(-dh) % R, axis=0)
                    tap = rolled * (m_prev if dh < 0 else m_next)
                part = jnp.dot(tap.astype(jnp.bfloat16), w_ref[kh],
                               preferred_element_type=jnp.float32)
                acc = part if acc is None else acc + part
            return acc                                           # (R, L) f32

        def batchnorm(acc, gamma_t, beta_t):
            """Training-mode BN, stats kept channel-tiled over lanes (f32)."""
            mean_t = jnp.sum(jnp.dot(acc, a, preferred_element_type=jnp.float32),
                             axis=0, keepdims=True) * (1.0 / N)          # (1, L)
            centered = acc - mean_t
            var_t = jnp.sum(jnp.dot(centered * centered, a,
                                    preferred_element_type=jnp.float32),
                            axis=0, keepdims=True) * (1.0 / N)           # (1, L)
            inv_t = jax.lax.rsqrt(var_t + EPS)
            return centered * (inv_t * gamma_t) + beta_t

        h = jnp.maximum(batchnorm(conv3x3(x, w1_ref), g1_ref[...], b1_ref[...]), 0.0)
        y = batchnorm(conv3x3(h, w2_ref), g2_ref[...], b2_ref[...])
        preact = y + x                              # identity residual (f32)
        out_ref[...] = jnp.maximum(preact, 0.0)
        preact_ref[...] = preact

    return kernel


def basic_block_forward(x_nchw, w1_oihw, g1, b1, w2_oihw, g2, b2):
    """Fused BasicBlock forward. NCHW in / NCHW out (PyTorch convention)."""
    B, Cin, H, W = x_nchw.shape
    Cout = w1_oihw.shape[0]
    assert Cin == Cout, "downsample=None path requires inplanes == planes"
    C = Cout
    R, L = B * H, W * C

    # ---- layout glue (no jnp.pad, no extra padded HBM temporaries) ----
    x2d = jnp.transpose(x_nchw, (0, 2, 3, 1)).astype(jnp.float32).reshape(R, L)

    def band_weights(w_oihw):
        # (3, W*Cin, W*Cout) bf16: for each kh, fold the kw taps and the
        # W-axis zero padding into one banded block matrix (fat K for the MXU).
        w_hwio = jnp.transpose(w_oihw, (2, 3, 1, 0)).astype(jnp.float32)  # (3,3,Ci,Co)
        mats = []
        for kh in range(3):
            m = jnp.zeros((L, L), jnp.float32)
            for kw in range(3):
                dw = kw - 1
                m = m + jnp.kron(jnp.eye(W, k=-dw, dtype=jnp.float32),
                                 w_hwio[kh, kw])
            mats.append(m)
        return jnp.stack(mats).astype(jnp.bfloat16)

    w1b = band_weights(w1_oihw)
    w2b = band_weights(w2_oihw)

    # gamma/beta tiled to the lane-dense (1, W*C) layout
    tile_c = lambda v: jnp.tile(v.astype(jnp.float32).reshape(1, C), (1, W))
    g1t, b1t, g2t, b2t = tile_c(g1), tile_c(b1), tile_c(g2), tile_c(b2)

    # channel-collapse matrix: A[w*C+c, w'*C+c'] = (c == c')
    cc = jnp.kron(jnp.ones((W, W), jnp.float32), jnp.eye(C, dtype=jnp.float32))

    # H-halo row masks for the rolled kh taps (constants, hoisted out of kernel)
    hid = (jnp.arange(R, dtype=jnp.int32) % H).reshape(R, 1)
    m_prev = (hid > 0).astype(jnp.float32)        # reading row h-1 is valid
    m_next = (hid < H - 1).astype(jnp.float32)    # reading row h+1 is valid

    vmem = pl.BlockSpec(memory_space=pltpu.MemorySpace.VMEM)
    out2d, preact2d = pl.pallas_call(
        _make_kernel(B, H, W, C),
        out_shape=(jax.ShapeDtypeStruct((R, L), jnp.float32),
                   jax.ShapeDtypeStruct((R, L), jnp.float32)),
        in_specs=[vmem] * 10,
        out_specs=(vmem, vmem),
    )(x2d, w1b, w2b, g1t, b1t, g2t, b2t, cc, m_prev, m_next)

    def to_nchw(y):
        return jnp.transpose(y.reshape(B, H, W, C), (0, 3, 1, 2))
    return to_nchw(out2d), to_nchw(preact2d)


# ---------------- pure-JAX references (for correctness checks) ----------------
def _bn_ref(x_nhwc, g, b):
    mean = jnp.mean(x_nhwc, axis=(0, 1, 2), keepdims=True)
    var = jnp.mean((x_nhwc - mean) ** 2, axis=(0, 1, 2), keepdims=True)
    return (x_nhwc - mean) * jax.lax.rsqrt(var + EPS) * g + b


def basic_block_ref(x_nchw, w1_oihw, g1, b1, w2_oihw, g2, b2,
                    conv_dtype=jnp.float32):
    x = jnp.transpose(x_nchw, (0, 2, 3, 1)).astype(jnp.float32)
    w1 = jnp.transpose(w1_oihw, (2, 3, 1, 0)).astype(jnp.float32)
    w2 = jnp.transpose(w2_oihw, (2, 3, 1, 0)).astype(jnp.float32)

    def conv(a, w):
        return jax.lax.conv_general_dilated(
            a.astype(conv_dtype), w.astype(conv_dtype),
            window_strides=(1, 1), padding=((1, 1), (1, 1)),
            dimension_numbers=("NHWC", "HWIO", "NHWC"),
            preferred_element_type=jnp.float32)

    h = jnp.maximum(_bn_ref(conv(x, w1), g1, b1), 0.0)
    y2 = _bn_ref(conv(h, w2), g2, b2)
    preact = y2 + x
    out = jnp.maximum(preact, 0.0)
    return jnp.transpose(out, (0, 3, 1, 2)), jnp.transpose(preact, (0, 3, 1, 2))


if __name__ == "__main__":
    key = jax.random.PRNGKey(0)
    # inplanes == planes == 8, stride=1, downsample=None; W*C = 128 (lane-dense)
    B, C, H, W = 2, 8, 16, 16

    k = jax.random.split(key, 7)
    x = jax.random.normal(k[0], (B, C, H, W), jnp.float32)
    w1 = jax.random.normal(k[1], (C, C, 3, 3), jnp.float32) * 0.1   # OIHW
    w2 = jax.random.normal(k[2], (C, C, 3, 3), jnp.float32) * 0.1
    g1 = 1.0 + 0.1 * jax.random.normal(k[3], (C,), jnp.float32)     # BN gamma
    b1 = 0.1 * jax.random.normal(k[4], (C,), jnp.float32)           # BN beta
    g2 = 1.0 + 0.1 * jax.random.normal(k[5], (C,), jnp.float32)
    b2 = 0.1 * jax.random.normal(k[6], (C,), jnp.float32)

    fwd = jax.jit(basic_block_forward)
    out, preact = fwd(x, w1, g1, b1, w2, g2, b2)
    jax.block_until_ready((out, preact))
    assert out.shape == (B, C, H, W) and preact.shape == (B, C, H, W)

    # Tight check vs a reference using the same numerical contract as the
    # kernel (bf16 conv operands, f32 accumulation, f32 BN).
    out_bf, pre_bf = basic_block_ref(x, w1, g1, b1, w2, g2, b2,
                                     conv_dtype=jnp.bfloat16)
    assert jnp.allclose(out, out_bf, atol=5e-3, rtol=5e-3), "out vs bf16-conv ref"
    assert jnp.allclose(preact, pre_bf, atol=5e-3, rtol=5e-3), "preact vs bf16-conv ref"

    # Loose check vs the full-f32 PyTorch-semantics reference (the gap is the
    # intentional bf16 cast of the MXU operands).
    out_32, pre_32 = basic_block_ref(x, w1, g1, b1, w2, g2, b2,
                                     conv_dtype=jnp.float32)
    assert jnp.allclose(out, out_32, atol=1e-1, rtol=1e-1), "out vs f32 ref"
    assert jnp.allclose(preact, pre_32, atol=1e-1, rtol=1e-1), "preact vs f32 ref"

    print("KERNEL_OK")
</pallas_src>

<mosaic_0001>
module attributes {stable_mosaic.version = 11 : i64} {
  func.func @kernel(%arg0: memref<32x128xf32, #tpu.memory_space<vmem>>, %arg1: memref<3x128x128xbf16, #tpu.memory_space<vmem>>, %arg2: memref<3x128x128xbf16, #tpu.memory_space<vmem>>, %arg3: memref<1x128xf32, #tpu.memory_space<vmem>>, %arg4: memref<1x128xf32, #tpu.memory_space<vmem>>, %arg5: memref<1x128xf32, #tpu.memory_space<vmem>>, %arg6: memref<1x128xf32, #tpu.memory_space<vmem>>, %arg7: memref<128x128xf32, #tpu.memory_space<vmem>>, %arg8: memref<32x1xf32, #tpu.memory_space<vmem>>, %arg9: memref<32x1xf32, #tpu.memory_space<vmem>>, %arg10: memref<32x128xf32, #tpu.memory_space<vmem>>, %arg11: memref<32x128xf32, #tpu.memory_space<vmem>>) attributes {dimension_semantics = [], scalar_prefetch = 0 : i64, scratch_operands = 0 : i64, tpu.core_type = #tpu.core_type<tc>} {
    %c0 = arith.constant 0 : index
    %c0_0 = arith.constant 0 : index
    %0 = vector.load %arg0[%c0, %c0_0] : memref<32x128xf32, #tpu.memory_space<vmem>>, vector<32x128xf32>
    %c0_1 = arith.constant 0 : index
    %c0_2 = arith.constant 0 : index
    %1 = vector.load %arg7[%c0_1, %c0_2] : memref<128x128xf32, #tpu.memory_space<vmem>>, vector<128x128xf32>
    %c0_3 = arith.constant 0 : index
    %c0_4 = arith.constant 0 : index
    %2 = vector.load %arg8[%c0_3, %c0_4] : memref<32x1xf32, #tpu.memory_space<vmem>>, vector<32x1xf32>
    %c0_5 = arith.constant 0 : index
    %c0_6 = arith.constant 0 : index
    %3 = vector.load %arg9[%c0_5, %c0_6] : memref<32x1xf32, #tpu.memory_space<vmem>>, vector<32x1xf32>
    %c1_i32 = arith.constant 1 : i32
    %4 = tpu.dynamic_rotate %0 by %c1_i32 dim 0 : vector<32x128xf32>, i32 -> vector<32x128xf32>
    %5 = vector.broadcast %2 : vector<32x1xf32> to vector<32x128xf32>
    %6 = arith.mulf %4, %5 : vector<32x128xf32>
    %7 = arith.truncf %6 : vector<32x128xf32> to vector<32x128xbf16>
    %c0_7 = arith.constant 0 : index
    %c0_8 = arith.constant 0 : index
    %c0_9 = arith.constant 0 : index
    %8 = vector.load %arg1[%c0_7, %c0_8, %c0_9] : memref<3x128x128xbf16, #tpu.memory_space<vmem>>, vector<1x128x128xbf16>
    %9 = vector.shape_cast %8 : vector<1x128x128xbf16> to vector<128x128xbf16>
    %cst = arith.constant dense<0.000000e+00> : vector<32x128xf32>
    %10 = tpu.matmul %7, %9, %cst {dimension_numbers = #tpu.dot_dimension_numbers<[1], [0], [0], [1], [0, 0, 1, 1], [], []>} : vector<32x128xbf16>, vector<128x128xbf16>, vector<32x128xf32> -> vector<32x128xf32>
    %11 = arith.truncf %0 : vector<32x128xf32> to vector<32x128xbf16>
    %c1 = arith.constant 1 : index
    %c0_10 = arith.constant 0 : index
    %c0_11 = arith.constant 0 : index
    %12 = vector.load %arg1[%c1, %c0_10, %c0_11] : memref<3x128x128xbf16, #tpu.memory_space<vmem>>, vector<1x128x128xbf16>
    %13 = vector.shape_cast %12 : vector<1x128x128xbf16> to vector<128x128xbf16>
    %cst_12 = arith.constant dense<0.000000e+00> : vector<32x128xf32>
    %14 = tpu.matmul %11, %13, %cst_12 {dimension_numbers = #tpu.dot_dimension_numbers<[1], [0], [0], [1], [0, 0, 1, 1], [], []>} : vector<32x128xbf16>, vector<128x128xbf16>, vector<32x128xf32> -> vector<32x128xf32>
    %15 = arith.addf %10, %14 : vector<32x128xf32>
    %c31_i32 = arith.constant 31 : i32
    %16 = tpu.dynamic_rotate %0 by %c31_i32 dim 0 : vector<32x128xf32>, i32 -> vector<32x128xf32>
    %17 = vector.broadcast %3 : vector<32x1xf32> to vector<32x128xf32>
    %18 = arith.mulf %16, %17 : vector<32x128xf32>
    %19 = arith.truncf %18 : vector<32x128xf32> to vector<32x128xbf16>
    %c2 = arith.constant 2 : index
    %c0_13 = arith.constant 0 : index
    %c0_14 = arith.constant 0 : index
    %20 = vector.load %arg1[%c2, %c0_13, %c0_14] : memref<3x128x128xbf16, #tpu.memory_space<vmem>>, vector<1x128x128xbf16>
    %21 = vector.shape_cast %20 : vector<1x128x128xbf16> to vector<128x128xbf16>
    %cst_15 = arith.constant dense<0.000000e+00> : vector<32x128xf32>
    %22 = tpu.matmul %19, %21, %cst_15 {dimension_numbers = #tpu.dot_dimension_numbers<[1], [0], [0], [1], [0, 0, 1, 1], [], []>} : vector<32x128xbf16>, vector<128x128xbf16>, vector<32x128xf32> -> vector<32x128xf32>
    %23 = arith.addf %15, %22 : vector<32x128xf32>
    %c0_16 = arith.constant 0 : index
    %c0_17 = arith.constant 0 : index
    %24 = vector.load %arg3[%c0_16, %c0_17] : memref<1x128xf32, #tpu.memory_space<vmem>>, vector<1x128xf32>
    %c0_18 = arith.constant 0 : index
    %c0_19 = arith.constant 0 : index
    %25 = vector.load %arg4[%c0_18, %c0_19] : memref<1x128xf32, #tpu.memory_space<vmem>>, vector<1x128xf32>
    %cst_20 = arith.constant dense<0.000000e+00> : vector<32x128xf32>
    %26 = tpu.matmul %23, %1, %cst_20 {dimension_numbers = #tpu.dot_dimension_numbers<[1], [0], [0], [1], [0, 0, 1, 1], [], []>} : vector<32x128xf32>, vector<128x128xf32>, vector<32x128xf32> -> vector<32x128xf32>
    %cst_21 = arith.constant dense<0.000000e+00> : vector<128xf32>
    %27 = vector.multi_reduction <add>, %26, %cst_21 [0] : vector<32x128xf32> to vector<128xf32>
    %28 = vector.shape_cast %27 : vector<128xf32> to vector<1x128xf32>
    %cst_22 = arith.constant 0.001953125 : f32
    %29 = vector.broadcast %cst_22 : f32 to vector<1x128xf32>
    %30 = arith.mulf %28, %29 : vector<1x128xf32>
    %31 = vector.broadcast %30 : vector<1x128xf32> to vector<32x128xf32>
    %32 = arith.subf %23, %31 : vector<32x128xf32>
    %33 = arith.mulf %32, %32 : vector<32x128xf32>
    %cst_23 = arith.constant dense<0.000000e+00> : vector<32x128xf32>
    %34 = tpu.matmul %33, %1, %cst_23 {dimension_numbers = #tpu.dot_dimension_numbers<[1], [0], [0], [1], [0, 0, 1, 1], [], []>} : vector<32x128xf32>, vector<128x128xf32>, vector<32x128xf32> -> vector<32x128xf32>
    %cst_24 = arith.constant dense<0.000000e+00> : vector<128xf32>
    %35 = vector.multi_reduction <add>, %34, %cst_24 [0] : vector<32x128xf32> to vector<128xf32>
    %36 = vector.shape_cast %35 : vector<128xf32> to vector<1x128xf32>
    %cst_25 = arith.constant 0.001953125 : f32
    %37 = vector.broadcast %cst_25 : f32 to vector<1x128xf32>
    %38 = arith.mulf %36, %37 : vector<1x128xf32>
    %cst_26 = arith.constant 9.99999974E-6 : f32
    %39 = vector.broadcast %cst_26 : f32 to vector<1x128xf32>
    %40 = arith.addf %38, %39 : vector<1x128xf32>
    %41 = math.rsqrt %40 : vector<1x128xf32>
    %42 = arith.mulf %41, %24 : vector<1x128xf32>
    %43 = vector.broadcast %42 : vector<1x128xf32> to vector<32x128xf32>
    %44 = arith.mulf %32, %43 : vector<32x128xf32>
    %45 = vector.broadcast %25 : vector<1x128xf32> to vector<32x128xf32>
    %46 = arith.addf %44, %45 : vector<32x128xf32>
    %cst_27 = arith.constant 0.000000e+00 : f32
    %47 = vector.broadcast %cst_27 : f32 to vector<32x128xf32>
    %48 = arith.maximumf %46, %47 : vector<32x128xf32>
    %c1_i32_28 = arith.constant 1 : i32
    %49 = tpu.dynamic_rotate %48 by %c1_i32_28 dim 0 : vector<32x128xf32>, i32 -> vector<32x128xf32>
    %50 = vector.broadcast %2 : vector<32x1xf32> to vector<32x128xf32>
    %51 = arith.mulf %49, %50 : vector<32x128xf32>
    %52 = arith.truncf %51 : vector<32x128xf32> to vector<32x128xbf16>
    %c0_29 = arith.constant 0 : index
    %c0_30 = arith.constant 0 : index
    %c0_31 = arith.constant 0 : index
    %53 = vector.load %arg2[%c0_29, %c0_30, %c0_31] : memref<3x128x128xbf16, #tpu.memory_space<vmem>>, vector<1x128x128xbf16>
    %54 = vector.shape_cast %53 : vector<1x128x128xbf16> to vector<128x128xbf16>
    %cst_32 = arith.constant dense<0.000000e+00> : vector<32x128xf32>
    %55 = tpu.matmul %52, %54, %cst_32 {dimension_numbers = #tpu.dot_dimension_numbers<[1], [0], [0], [1], [0, 0, 1, 1], [], []>} : vector<32x128xbf16>, vector<128x128xbf16>, vector<32x128xf32> -> vector<32x128xf32>
    %56 = arith.truncf %48 : vector<32x128xf32> to vector<32x128xbf16>
    %c1_33 = arith.constant 1 : index
    %c0_34 = arith.constant 0 : index
    %c0_35 = arith.constant 0 : index
    %57 = vector.load %arg2[%c1_33, %c0_34, %c0_35] : memref<3x128x128xbf16, #tpu.memory_space<vmem>>, vector<1x128x128xbf16>
    %58 = vector.shape_cast %57 : vector<1x128x128xbf16> to vector<128x128xbf16>
    %cst_36 = arith.constant dense<0.000000e+00> : vector<32x128xf32>
    %59 = tpu.matmul %56, %58, %cst_36 {dimension_numbers = #tpu.dot_dimension_numbers<[1], [0], [0], [1], [0, 0, 1, 1], [], []>} : vector<32x128xbf16>, vector<128x128xbf16>, vector<32x128xf32> -> vector<32x128xf32>
    %60 = arith.addf %55, %59 : vector<32x128xf32>
    %c31_i32_37 = arith.constant 31 : i32
    %61 = tpu.dynamic_rotate %48 by %c31_i32_37 dim 0 : vector<32x128xf32>, i32 -> vector<32x128xf32>
    %62 = vector.broadcast %3 : vector<32x1xf32> to vector<32x128xf32>
    %63 = arith.mulf %61, %62 : vector<32x128xf32>
    %64 = arith.truncf %63 : vector<32x128xf32> to vector<32x128xbf16>
    %c2_38 = arith.constant 2 : index
    %c0_39 = arith.constant 0 : index
    %c0_40 = arith.constant 0 : index
    %65 = vector.load %arg2[%c2_38, %c0_39, %c0_40] : memref<3x128x128xbf16, #tpu.memory_space<vmem>>, vector<1x128x128xbf16>
    %66 = vector.shape_cast %65 : vector<1x128x128xbf16> to vector<128x128xbf16>
    %cst_41 = arith.constant dense<0.000000e+00> : vector<32x128xf32>
    %67 = tpu.matmul %64, %66, %cst_41 {dimension_numbers = #tpu.dot_dimension_numbers<[1], [0], [0], [1], [0, 0, 1, 1], [], []>} : vector<32x128xbf16>, vector<128x128xbf16>, vector<32x128xf32> -> vector<32x128xf32>
    %68 = arith.addf %60, %67 : vector<32x128xf32>
    %c0_42 = arith.constant 0 : index
    %c0_43 = arith.constant 0 : index
    %69 = vector.load %arg5[%c0_42, %c0_43] : memref<1x128xf32, #tpu.memory_space<vmem>>, vector<1x128xf32>
    %c0_44 = arith.constant 0 : index
    %c0_45 = arith.constant 0 : index
    %70 = vector.load %arg6[%c0_44, %c0_45] : memref<1x128xf32, #tpu.memory_space<vmem>>, vector<1x128xf32>
    %cst_46 = arith.constant dense<0.000000e+00> : vector<32x128xf32>
    %71 = tpu.matmul %68, %1, %cst_46 {dimension_numbers = #tpu.dot_dimension_numbers<[1], [0], [0], [1], [0, 0, 1, 1], [], []>} : vector<32x128xf32>, vector<128x128xf32>, vector<32x128xf32> -> vector<32x128xf32>
    %cst_47 = arith.constant dense<0.000000e+00> : vector<128xf32>
    %72 = vector.multi_reduction <add>, %71, %cst_47 [0] : vector<32x128xf32> to vector<128xf32>
    %73 = vector.shape_cast %72 : vector<128xf32> to vector<1x128xf32>
    %cst_48 = arith.constant 0.001953125 : f32
    %74 = vector.broadcast %cst_48 : f32 to vector<1x128xf32>
    %75 = arith.mulf %73, %74 : vector<1x128xf32>
    %76 = vector.broadcast %75 : vector<1x128xf32> to vector<32x128xf32>
    %77 = arith.subf %68, %76 : vector<32x128xf32>
    %78 = arith.mulf %77, %77 : vector<32x128xf32>
    %cst_49 = arith.constant dense<0.000000e+00> : vector<32x128xf32>
    %79 = tpu.matmul %78, %1, %cst_49 {dimension_numbers = #tpu.dot_dimension_numbers<[1], [0], [0], [1], [0, 0, 1, 1], [], []>} : vector<32x128xf32>, vector<128x128xf32>, vector<32x128xf32> -> vector<32x128xf32>
    %cst_50 = arith.constant dense<0.000000e+00> : vector<128xf32>
    %80 = vector.multi_reduction <add>, %79, %cst_50 [0] : vector<32x128xf32> to vector<128xf32>
    %81 = vector.shape_cast %80 : vector<128xf32> to vector<1x128xf32>
    %cst_51 = arith.constant 0.001953125 : f32
    %82 = vector.broadcast %cst_51 : f32 to vector<1x128xf32>
    %83 = arith.mulf %81, %82 : vector<1x128xf32>
    %cst_52 = arith.constant 9.99999974E-6 : f32
    %84 = vector.broadcast %cst_52 : f32 to vector<1x128xf32>
    %85 = arith.addf %83, %84 : vector<1x128xf32>
    %86 = math.rsqrt %85 : vector<1x128xf32>
    %87 = arith.mulf %86, %69 : vector<1x128xf32>
    %88 = vector.broadcast %87 : vector<1x128xf32> to vector<32x128xf32>
    %89 = arith.mulf %77, %88 : vector<32x128xf32>
    %90 = vector.broadcast %70 : vector<1x128xf32> to vector<32x128xf32>
    %91 = arith.addf %89, %90 : vector<32x128xf32>
    %92 = arith.addf %91, %0 : vector<32x128xf32>
    %cst_53 = arith.constant 0.000000e+00 : f32
    %93 = vector.broadcast %cst_53 : f32 to vector<32x128xf32>
    %94 = arith.maximumf %92, %93 : vector<32x128xf32>
    %c0_54 = arith.constant 0 : index
    %c0_55 = arith.constant 0 : index
    %95 = vector.load %arg10[%c0_54, %c0_55] : memref<32x128xf32, #tpu.memory_space<vmem>>, vector<32x128xf32>
    tpu.vector_store %arg10[%c0_54, %c0_55], %94 {strides = array<i32>} : memref<32x128xf32, #tpu.memory_space<vmem>>, vector<32x128xf32>,
    %c0_56 = arith.constant 0 : index
    %c0_57 = arith.constant 0 : index
    %96 = vector.load %arg11[%c0_56, %c0_57] : memref<32x128xf32, #tpu.memory_space<vmem>>, vector<32x128xf32>
    tpu.vector_store %arg11[%c0_56, %c0_57], %92 {strides = array<i32>} : memref<32x128xf32, #tpu.memory_space<vmem>>, vector<32x128xf32>,
    return
  }
}

</mosaic_0001>

<llo_original>
// kernel: basic_block_forward.1
$region0: #{basic_block_forward.1}
  #allocation0 [shape = 'u32[]', space=smem, size = 0x4, offset = 0x4, fixed_abs, tag = 'smem constant byte address 0x4 - core index']
  #allocation1 [shape = 'u32[144,128]{1,0:T(1,128)}', space=vmem, size = 0x12000, scoped, tag = 'internal scratch']
  %s0 = inlined_call_operand.vmem [shape: f32[32,128], index: 0, kind: input, shape index: {}]
  %s1 = inlined_call_operand.vmem [shape: bf16[3,128,128], index: 1, kind: input, shape index: {}]
  %s2 = inlined_call_operand.vmem [shape: bf16[3,128,128], index: 2, kind: input, shape index: {}]
  %s3 = inlined_call_operand.vmem [shape: f32[1,128], index: 3, kind: input, shape index: {}]
  %s4 = inlined_call_operand.vmem [shape: f32[1,128], index: 4, kind: input, shape index: {}]
  %s5 = inlined_call_operand.vmem [shape: f32[1,128], index: 5, kind: input, shape index: {}]
  %s6 = inlined_call_operand.vmem [shape: f32[1,128], index: 6, kind: input, shape index: {}]
  %s7 = inlined_call_operand.vmem [shape: f32[128,128], index: 7, kind: input, shape index: {}]
  %s8 = inlined_call_operand.vmem [shape: f32[32,1], index: 8, kind: input, shape index: {}]
  %s9 = inlined_call_operand.vmem [shape: f32[32,1], index: 9, kind: input, shape index: {}]
  %s10 = inlined_call_operand.vmem [shape: f32[32,128], index: 10, kind: output, shape index: {0}]
  %s11 = inlined_call_operand.vmem [shape: f32[32,128], index: 11, kind: output, shape index: {1}]
  %12 = xla_tuple %s10, %s11
  %s13 = sld [smem:[#allocation0]]
  $region58: #{basic_block_forward.1} parent=0
    _
  %s15 = ssub.s32 1, %s13
  %s16 = scalar_select 0, %s15, %s13
  // Predicated region
  $region2: #{basic_block_forward.1} parent=0 // pred_check
    _
  $region3: #{basic_block_forward.1} parent=0 // pred_check_branch
    %18 = sbr.rel (0) target = $region5
  $region4: #{basic_block_forward.1} parent=0 // pred_region
    _
  $region5: #{basic_block_forward.1} parent=0 // pred_fallthru
    _
  // Predicated region
  $region6: #{basic_block_forward.1} parent=0 // pred_check
    _
  $region7: #{basic_block_forward.1} parent=0 // pred_check_branch
    %20 = sbr.rel (0) target = $region9
  $region8: #{basic_block_forward.1} parent=0 // pred_region
    _
  $region9: #{basic_block_forward.1} parent=0 // pred_fallthru
    _
  // Predicated region
  $region10: #{basic_block_forward.1} parent=0 // pred_check
    _
  $region11: #{basic_block_forward.1} parent=0 // pred_check_branch
    %22 = sbr.rel (0) target = $region13
  $region12: #{basic_block_forward.1} parent=0 // pred_region
    _
  $region13: #{basic_block_forward.1} parent=0 // pred_fallthru
    _
  // Predicated region
  $region14: #{basic_block_forward.1} parent=0 // pred_check
    _
  $region15: #{basic_block_forward.1} parent=0 // pred_check_branch
    %24 = sbr.rel (0) target = $region17
  $region16: #{basic_block_forward.1} parent=0 // pred_region
    _
  $region17: #{basic_block_forward.1} parent=0 // pred_fallthru
    _
  // Predicated region
  $region18: #{basic_block_forward.1} parent=0 // pred_check
    _
  $region19: #{basic_block_forward.1} parent=0 // pred_check_branch
    %26 = sbr.rel (0) target = $region21
  $region20: #{basic_block_forward.1} parent=0 // pred_region
    _
  $region21: #{basic_block_forward.1} parent=0 // pred_fallthru
    _
  // Predicated region
  $region22: #{basic_block_forward.1} parent=0 // pred_check
    _
  $region23: #{basic_block_forward.1} parent=0 // pred_check_branch
    %28 = sbr.rel (0) target = $region25
  $region24: #{basic_block_forward.1} parent=0 // pred_region
    _
  $region25: #{basic_block_forward.1} parent=0 // pred_fallthru
    _
  // Predicated region
  $region26: #{basic_block_forward.1} parent=0 // pred_check
    _
  $region27: #{basic_block_forward.1} parent=0 // pred_check_branch
    %30 = sbr.rel (0) target = $region29
  $region28: #{basic_block_forward.1} parent=0 // pred_region
    _
  $region29: #{basic_block_forward.1} parent=0 // pred_fallthru
    _
  // Predicated region
  $region30: #{basic_block_forward.1} parent=0 // pred_check
    _
  $region31: #{basic_block_forward.1} parent=0 // pred_check_branch
    %32 = sbr.rel (0) target = $region33
  $region32: #{basic_block_forward.1} parent=0 // pred_region
    _
  $region33: #{basic_block_forward.1} parent=0 // pred_fallthru
    _
  // Predicated region
  $region34: #{basic_block_forward.1} parent=0 // pred_check
    _
  $region35: #{basic_block_forward.1} parent=0 // pred_check_branch
    %34 = sbr.rel (0) target = $region37
  $region36: #{basic_block_forward.1} parent=0 // pred_region
    _
  $region37: #{basic_block_forward.1} parent=0 // pred_fallthru
    _
  // Predicated region
  $region38: #{basic_block_forward.1} parent=0 // pred_check
    _
  $region39: #{basic_block_forward.1} parent=0 // pred_check_branch
    %36 = sbr.rel (0) target = $region41
  $region40: #{basic_block_forward.1} parent=0 // pred_region
    _
  $region41: #{basic_block_forward.1} parent=0 // pred_fallthru
    _
  %v38 = vld [vmem:[%s0] sm:$0xff]
  %v39 = vld [vmem:[%s0 + $0x8] sm:$0xff]
  %v40 = vld [vmem:[%s0 + $0x10] sm:$0xff]
  %v41 = vld [vmem:[%s0 + $0x18] sm:$0xff]
  %v42 = vld [vmem:[%s7] sm:$0xff]
  %v43 = vld [vmem:[%s7 + $0x8] sm:$0xff]
  %v44 = vld [vmem:[%s7 + $0x10] sm:$0xff]
  %v45 = vld [vmem:[%s7 + $0x18] sm:$0xff]
  %v46 = vld [vmem:[%s7 + $0x20] sm:$0xff]
  %v47 = vld [vmem:[%s7 + $0x28] sm:$0xff]
  %v48 = vld [vmem:[%s7 + $0x30] sm:$0xff]
  %v49 = vld [vmem:[%s7 + $0x38] sm:$0xff]
  %v50 = vld [vmem:[%s7 + $0x40] sm:$0xff]
  %v51 = vld [vmem:[%s7 + $0x48] sm:$0xff]
  %v52 = vld [vmem:[%s7 + $0x50] sm:$0xff]
  %v53 = vld [vmem:[%s7 + $0x58] sm:$0xff]
  %v54 = vld [vmem:[%s7 + $0x60] sm:$0xff]
  %v55 = vld [vmem:[%s7 + $0x68] sm:$0xff]
  %v56 = vld [vmem:[%s7 + $0x70] sm:$0xff]
  %v57 = vld [vmem:[%s7 + $0x78] sm:$0xff]
  %v58 = vld [vmem:[%s8] sm:$0xff]
  %v59 = vld [vmem:[%s8 + $0x8] sm:$0xff]
  %v60 = vld [vmem:[%s8 + $0x10] sm:$0xff]
  %v61 = vld [vmem:[%s8 + $0x18] sm:$0xff]
  %v62 = vld [vmem:[%s9] sm:$0xff]
  %v63 = vld [vmem:[%s9 + $0x8] sm:$0xff]
  %v64 = vld [vmem:[%s9 + $0x10] sm:$0xff]
  %v65 = vld [vmem:[%s9 + $0x18] sm:$0xff]
  %v66 = vrot.slane %v38, 7
  %v67 = vrot.slane %v39, 7
  %v68 = vrot.slane %v40, 7
  %v69 = vrot.slane %v41, 7
  %v70 = vlaneseq
  %v71 = vshrl.u32 %v70, 7
  %vm72 = vcmp.lt.s32.totalorder %v71, 1
  %v73 = vsel %vm72, %v68, %v69
  %v74 = vsel %vm72, %v67, %v68
  %v75 = vsel %vm72, %v66, %v67
  %v76 = vsel %vm72, %v69, %v66
  %78 = vset.pattern.permute.xlu0 0
  %79 = vperm.xlu0 %78, %v58
  %v80 = vpop.permute.xlu0 %79
  %83 = vset.pattern.permute.xlu0 0
  %84 = vperm.xlu0 %83, %v59
  %v85 = vpop.permute.xlu0 %84
  %88 = vset.pattern.permute.xlu0 0
  %89 = vperm.xlu0 %88, %v60
  %v90 = vpop.permute.xlu0 %89
  %93 = vset.pattern.permute.xlu0 0
  %94 = vperm.xlu0 %93, %v61
  %v95 = vpop.permute.xlu0 %94
  %v97 = vmul.f32 %v76, %v80
  %v98 = vmul.f32 %v75, %v85
  %v99 = vmul.f32 %v74, %v90
  %v100 = vmul.f32 %v73, %v95
  %v101 = vpack.c.bf16 %v98, %v97
  %v102 = vpack.c.bf16 %v100, %v99
  %v103 = vld [vmem:[%s1] sm:$0xf]
  %v104 = vld [vmem:[%s1 + $0x4] sm:$0xf]
  %v105 = vld [vmem:[%s1 + $0x8] sm:$0xf]
  %v106 = vld [vmem:[%s1 + $0xc] sm:$0xf]
  %v107 = vld [vmem:[%s1 + $0x10] sm:$0xf]
  %v108 = vld [vmem:[%s1 + $0x14] sm:$0xf]
  %v109 = vld [vmem:[%s1 + $0x18] sm:$0xf]
  %v110 = vld [vmem:[%s1 + $0x1c] sm:$0xf]
  %v111 = vld [vmem:[%s1 + $0x20] sm:$0xf]
  %v112 = vld [vmem:[%s1 + $0x24] sm:$0xf]
  %v113 = vld [vmem:[%s1 + $0x28] sm:$0xf]
  %v114 = vld [vmem:[%s1 + $0x2c] sm:$0xf]
  %v115 = vld [vmem:[%s1 + $0x30] sm:$0xf]
  %v116 = vld [vmem:[%s1 + $0x34] sm:$0xf]
  %v117 = vld [vmem:[%s1 + $0x38] sm:$0xf]
  %v118 = vld [vmem:[%s1 + $0x3c] sm:$0xf]
  %v119 = vpack.c.bf16 %v39, %v38
  %v120 = vpack.c.bf16 %v41, %v40
  %s121 = scalar_lea.vmem %s1, 64
  %v122 = vld [vmem:[%s121] sm:$0xf]
  %v123 = vld [vmem:[%s121 + $0x4] sm:$0xf]
  %v124 = vld [vmem:[%s121 + $0x8] sm:$0xf]
  %v125 = vld [vmem:[%s121 + $0xc] sm:$0xf]
  %v126 = vld [vmem:[%s121 + $0x10] sm:$0xf]
  %v127 = vld [vmem:[%s121 + $0x14] sm:$0xf]
  %v128 = vld [vmem:[%s121 + $0x18] sm:$0xf]
  %v129 = vld [vmem:[%s121 + $0x1c] sm:$0xf]
  %v130 = vld [vmem:[%s121 + $0x20] sm:$0xf]
  %v131 = vld [vmem:[%s121 + $0x24] sm:$0xf]
  %v132 = vld [vmem:[%s121 + $0x28] sm:$0xf]
  %v133 = vld [vmem:[%s121 + $0x2c] sm:$0xf]
  %v134 = vld [vmem:[%s121 + $0x30] sm:$0xf]
  %v135 = vld [vmem:[%s121 + $0x34] sm:$0xf]
  %v136 = vld [vmem:[%s121 + $0x38] sm:$0xf]
  %v137 = vld [vmem:[%s121 + $0x3c] sm:$0xf]
  %v154 = vunpack.c.l.b16 %v122
  %v155 = vunpack.c.l.b16 %v123
  %v156 = vunpack.c.l.b16 %v124
  %v157 = vunpack.c.l.b16 %v125
  %v158 = vunpack.c.l.b16 %v126
  %v159 = vunpack.c.l.b16 %v127
  %v160 = vunpack.c.l.b16 %v128
  %v161 = vunpack.c.l.b16 %v129
  %v162 = vunpack.c.l.b16 %v130
  %v163 = vunpack.c.l.b16 %v131
  %v164 = vunpack.c.l.b16 %v132
  %v165 = vunpack.c.l.b16 %v133
  %v166 = vunpack.c.l.b16 %v134
  %v167 = vunpack.c.l.b16 %v135
  %v168 = vunpack.c.l.b16 %v136
  %v169 = vunpack.c.l.b16 %v137
  %v170 = vpack.c.b16 %v155, %v154
  %v171 = vpack.c.b16 %v157, %v156
  %v172 = vpack.c.b16 %v159, %v158
  %v173 = vpack.c.b16 %v161, %v160
  %v174 = vpack.c.b16 %v163, %v162
  %v175 = vpack.c.b16 %v165, %v164
  %v176 = vpack.c.b16 %v167, %v166
  %v177 = vpack.c.b16 %v169, %v168
  %186 = vmatprep.subr.bf16.mxu0 0
  %187 = vmatpush1.bf16.msra.mxu0 %v170
  %188 = vmatprep.subr.bf16.mxu0 0
  %189 = vmatpush1.bf16.msra.mxu0 %v171
  %190 = vmatprep.subr.bf16.mxu0 0
  %191 = vmatpush1.bf16.msra.mxu0 %v172
  %192 = vmatprep.subr.bf16.mxu0 0
  %193 = vmatpush1.bf16.msra.mxu0 %v173
  %194 = vmatprep.subr.bf16.mxu0 0
  %195 = vmatpush1.bf16.msra.mxu0 %v174
  %196 = vmatprep.subr.bf16.mxu0 0
  %197 = vmatpush1.bf16.msra.mxu0 %v175
  %198 = vmatprep.subr.bf16.mxu0 0
  %199 = vmatpush1.bf16.msra.mxu0 %v176
  %200 = vmatprep.subr.bf16.mxu0 0
  %201 = vmatpush1.bf16.msra.mxu0 %v177
  %202 = vmatprep.subr.bf16.mxu0 0
  %203 = vmatpush1.bf16.msra.mxu0 0
  %204 = vmatprep.subr.bf16.mxu0 0
  %205 = vmatpush1.bf16.msra.mxu0 0
  %206 = vmatprep.subr.bf16.mxu0 0
  %207 = vmatpush1.bf16.msra.mxu0 0
  %208 = vmatprep.subr.bf16.mxu0 0
  %209 = vmatpush1.bf16.msra.mxu0 0
  %210 = vmatprep.subr.bf16.mxu0 0
  %211 = vmatpush1.bf16.msra.mxu0 0
  %212 = vmatprep.subr.bf16.mxu0 0
  %213 = vmatpush1.bf16.msra.mxu0 0
  %214 = vmatprep.subr.bf16.mxu0 0
  %215 = vmatpush1.bf16.msra.mxu0 0
  %216 = vmatprep.subr.bf16.mxu0 0
  %217 = vmatpush1.bf16.msra.mxu0 0
  %218 = vmatprep.mubr.bf16.mxu0 0
  %219 = vmatmul.mubr.bf16.gmra.mrb[0].mxu0 %v119
  %v220 = vpop.f32.mrb[0].mxu0
  %v221 = vadd.f32 0.0, %v220
  %v222 = vpop.f32.mrb[0].mxu0
  %v223 = vpop.f32.mrb[0].mxu0
  %v224 = vadd.f32 0.0, %v223
  %v225 = vpop.f32.mrb[0].mxu0
  %226 = vmatprep.mubr.bf16.mxu0 0
  %227 = vmatmul.mubr.bf16.gmra.mrb[0].mxu0 %v120
  %v228 = vpop.f32.mrb[0].mxu0
  %v229 = vadd.f32 0.0, %v228
  %v230 = vpop.f32.mrb[0].mxu0
  %v231 = vpop.f32.mrb[0].mxu0
  %v232 = vadd.f32 0.0, %v231
  %v233 = vpop.f32.mrb[0].mxu0
  %234 = vdwg.mxu0
  %v251 = vunpack.c.l.b16 %v103
  %v252 = vunpack.c.l.b16 %v104
  %v253 = vunpack.c.l.b16 %v105
  %v254 = vunpack.c.l.b16 %v106
  %v255 = vunpack.c.l.b16 %v107
  %v256 = vunpack.c.l.b16 %v108
  %v257 = vunpack.c.l.b16 %v109
  %v258 = vunpack.c.l.b16 %v110
  %v259 = vunpack.c.l.b16 %v111
  %v260 = vunpack.c.l.b16 %v112
  %v261 = vunpack.c.l.b16 %v113
  %v262 = vunpack.c.l.b16 %v114
  %v263 = vunpack.c.l.b16 %v115
  %v264 = vunpack.c.l.b16 %v116
  %v265 = vunpack.c.l.b16 %v117
  %v266 = vunpack.c.l.b16 %v118
  %v267 = vpack.c.b16 %v252, %v251
  %v268 = vpack.c.b16 %v254, %v253
  %v269 = vpack.c.b16 %v256, %v255
  %v270 = vpack.c.b16 %v258, %v257
  %v271 = vpack.c.b16 %v260, %v259
  %v272 = vpack.c.b16 %v262, %v261
  %v273 = vpack.c.b16 %v264, %v263
  %v274 = vpack.c.b16 %v266, %v265
  %283 = vmatprep.subr.bf16.mxu0 0
  %284 = vmatpush1.bf16.msra.mxu0 %v267
  %285 = vmatprep.subr.bf16.mxu0 0
  %286 = vmatpush1.bf16.msra.mxu0 %v268
  %287 = vmatprep.subr.bf16.mxu0 0
  %288 = vmatpush1.bf16.msra.mxu0 %v269
  %289 = vmatprep.subr.bf16.mxu0 0
  %290 = vmatpush1.bf16.msra.mxu0 %v270
  %291 = vmatprep.subr.bf16.mxu0 0
  %292 = vmatpush1.bf16.msra.mxu0 %v271
  %293 = vmatprep.subr.bf16.mxu0 0
  %294 = vmatpush1.bf16.msra.mxu0 %v272
  %295 = vmatprep.subr.bf16.mxu0 0
  %296 = vmatpush1.bf16.msra.mxu0 %v273
  %297 = vmatprep.subr.bf16.mxu0 0
  %298 = vmatpush1.bf16.msra.mxu0 %v274
  %299 = vmatprep.subr.bf16.mxu0 0
  %300 = vmatpush1.bf16.msra.mxu0 0
  %301 = vmatprep.subr.bf16.mxu0 0
  %302 = vmatpush1.bf16.msra.mxu0 0
  %303 = vmatprep.subr.bf16.mxu0 0
  %304 = vmatpush1.bf16.msra.mxu0 0
  %305 = vmatprep.subr.bf16.mxu0 0
  %306 = vmatpush1.bf16.msra.mxu0 0
  %307 = vmatprep.subr.bf16.mxu0 0
  %308 = vmatpush1.bf16.msra.mxu0 0
  %309 = vmatprep.subr.bf16.mxu0 0
  %310 = vmatpush1.bf16.msra.mxu0 0
  %311 = vmatprep.subr.bf16.mxu0 0
  %312 = vmatpush1.bf16.msra.mxu0 0
  %313 = vmatprep.subr.bf16.mxu0 0
  %314 = vmatpush1.bf16.msra.mxu0 0
  %315 = vmatprep.mubr.bf16.mxu0 0
  %316 = vmatmul.mubr.bf16.gmra.mrb[0].mxu0 %v101
  %v317 = vpop.f32.mrb[0].mxu0
  %v318 = vadd.f32 %v221, %v317
  %v319 = vpop.f32.mrb[0].mxu0
  %v320 = vpop.f32.mrb[0].mxu0
  %v321 = vadd.f32 %v224, %v320
  %v322 = vpop.f32.mrb[0].mxu0
  %323 = vmatprep.mubr.bf16.mxu0 0
  %324 = vmatmul.mubr.bf16.gmra.mrb[0].mxu0 %v102
  %v325 = vpop.f32.mrb[0].mxu0
  %v326 = vadd.f32 %v229, %v325
  %v327 = vpop.f32.mrb[0].mxu0
  %v328 = vpop.f32.mrb[0].mxu0
  %v329 = vadd.f32 %v232, %v328
  %v330 = vpop.f32.mrb[0].mxu0
  %331 = vdwg.mxu0
  %v332 = vrot.slane %v38, 1
  %v333 = vrot.slane %v39, 1
  %v334 = vrot.slane %v40, 1
  %v335 = vrot.slane %v41, 1
  %vm336 = vcmp.lt.s32.totalorder %v71, 7
  %v337 = vsel %vm336, %v334, %v335
  %v338 = vsel %vm336, %v333, %v334
  %v339 = vsel %vm336, %v332, %v333
  %v340 = vsel %vm336, %v335, %v332
  %342 = vset.pattern.permute.xlu0 0
  %343 = vperm.xlu0 %342, %v62
  %v344 = vpop.permute.xlu0 %343
  %347 = vset.pattern.permute.xlu0 0
  %348 = vperm.xlu0 %347, %v63
  %v349 = vpop.permute.xlu0 %348
  %352 = vset.pattern.permute.xlu0 0
  %353 = vperm.xlu0 %352, %v64
  %v354 = vpop.permute.xlu0 %353
  %357 = vset.pattern.permute.xlu0 0
  %358 = vperm.xlu0 %357, %v65
  %v359 = vpop.permute.xlu0 %358
  %v361 = vmul.f32 %v339, %v344
  %v362 = vmul.f32 %v338, %v349
  %v363 = vmul.f32 %v337, %v354
  %v364 = vmul.f32 %v340, %v359
  %v365 = vpack.c.bf16 %v362, %v361
  %v366 = vpack.c.bf16 %v364, %v363
  %s367 = scalar_lea.vmem %s1, 128
  %v368 = vld [vmem:[%s367] sm:$0xf]
  %v369 = vld [vmem:[%s367 + $0x4] sm:$0xf]
  %v370 = vld [vmem:[%s367 + $0x8] sm:$0xf]
  %v371 = vld [vmem:[%s367 + $0xc] sm:$0xf]
  %v372 = vld [vmem:[%s367 + $0x10] sm:$0xf]
  %v373 = vld [vmem:[%s367 + $0x14] sm:$0xf]
  %v374 = vld [vmem:[%s367 + $0x18] sm:$0xf]
  %v375 = vld [vmem:[%s367 + $0x1c] sm:$0xf]
  %v376 = vld [vmem:[%s367 + $0x20] sm:$0xf]
  %v377 = vld [vmem:[%s367 + $0x24] sm:$0xf]
  %v378 = vld [vmem:[%s367 + $0x28] sm:$0xf]
  %v379 = vld [vmem:[%s367 + $0x2c] sm:$0xf]
  %v380 = vld [vmem:[%s367 + $0x30] sm:$0xf]
  %v381 = vld [vmem:[%s367 + $0x34] sm:$0xf]
  %v382 = vld [vmem:[%s367 + $0x38] sm:$0xf]
  %v383 = vld [vmem:[%s367 + $0x3c] sm:$0xf]
  %v400 = vunpack.c.l.b16 %v368
  %v401 = vunpack.c.l.b16 %v369
  %v402 = vunpack.c.l.b16 %v370
  %v403 = vunpack.c.l.b16 %v371
  %v404 = vunpack.c.l.b16 %v372
  %v405 = vunpack.c.l.b16 %v373
  %v406 = vunpack.c.l.b16 %v374
  %v407 = vunpack.c.l.b16 %v375
  %v408 = vunpack.c.l.b16 %v376
  %v409 = vunpack.c.l.b16 %v377
  %v410 = vunpack.c.l.b16 %v378
  %v411 = vunpack.c.l.b16 %v379
  %v412 = vunpack.c.l.b16 %v380
  %v413 = vunpack.c.l.b16 %v381
  %v414 = vunpack.c.l.b16 %v382
  %v415 = vunpack.c.l.b16 %v383
  %v416 = vpack.c.b16 %v401, %v400
  %v417 = vpack.c.b16 %v403, %v402
  %v418 = vpack.c.b16 %v405, %v404
  %v419 = vpack.c.b16 %v407, %v406
  %v420 = vpack.c.b16 %v409, %v408
  %v421 = vpack.c.b16 %v411, %v410
  %v422 = vpack.c.b16 %v413, %v412
  %v423 = vpack.c.b16 %v415, %v414
  %432 = vmatprep.subr.bf16.mxu0 0
  %433 = vmatpush1.bf16.msra.mxu0 %v416
  %434 = vmatprep.subr.bf16.mxu0 0
  %435 = vmatpush1.bf16.msra.mxu0 %v417
  %436 = vmatprep.subr.bf16.mxu0 0
  %437 = vmatpush1.bf16.msra.mxu0 %v418
  %438 = vmatprep.subr.bf16.mxu0 0
  %439 = vmatpush1.bf16.msra.mxu0 %v419
  %440 = vmatprep.subr.bf16.mxu0 0
  %441 = vmatpush1.bf16.msra.mxu0 %v420
  %442 = vmatprep.subr.bf16.mxu0 0
  %443 = vmatpush1.bf16.msra.mxu0 %v421
  %444 = vmatprep.subr.bf16.mxu0 0
  %445 = vmatpush1.bf16.msra.mxu0 %v422
  %446 = vmatprep.subr.bf16.mxu0 0
  %447 = vmatpush1.bf16.msra.mxu0 %v423
  %448 = vmatprep.subr.bf16.mxu0 0
  %449 = vmatpush1.bf16.msra.mxu0 0
  %450 = vmatprep.subr.bf16.mxu0 0
  %451 = vmatpush1.bf16.msra.mxu0 0
  %452 = vmatprep.subr.bf16.mxu0 0
  %453 = vmatpush1.bf16.msra.mxu0 0
  %454 = vmatprep.subr.bf16.mxu0 0
  %455 = vmatpush1.bf16.msra.mxu0 0
  %456 = vmatprep.subr.bf16.mxu0 0
  %457 = vmatpush1.bf16.msra.mxu0 0
  %458 = vmatprep.subr.bf16.mxu0 0
  %459 = vmatpush1.bf16.msra.mxu0 0
  %460 = vmatprep.subr.bf16.mxu0 0
  %461 = vmatpush1.bf16.msra.mxu0 0
  %462 = vmatprep.subr.bf16.mxu0 0
  %463 = vmatpush1.bf16.msra.mxu0 0
  %464 = vmatprep.mubr.bf16.mxu0 0
  %465 = vmatmul.mubr.bf16.gmra.mrb[0].mxu0 %v365
  %v466 = vpop.f32.mrb[0].mxu0
  %v467 = vadd.f32 0.0, %v466
  %v468 = vpop.f32.mrb[0].mxu0
  %v469 = vpop.f32.mrb[0].mxu0
  %v470 = vadd.f32 0.0, %v469
  %v471 = vpop.f32.mrb[0].mxu0
  %472 = vmatprep.mubr.bf16.mxu0 0
  %473 = vmatmul.mubr.bf16.gmra.mrb[0].mxu0 %v366
  %v474 = vpop.f32.mrb[0].mxu0
  %v475 = vadd.f32 0.0, %v474
  %v476 = vpop.f32.mrb[0].mxu0
  %v477 = vpop.f32.mrb[0].mxu0
  %v478 = vadd.f32 0.0, %v477
  %v479 = vpop.f32.mrb[0].mxu0
  %480 = vdwg.mxu0
  %v481 = vadd.f32 %v318, %v467
  %v482 = vadd.f32 %v321, %v470
  %v483 = vadd.f32 %v326, %v475
  %v484 = vadd.f32 %v329, %v478
  %v485 = vld [vmem:[%s3] sm:$0x1]
  %v486 = vld [vmem:[%s4] sm:$0x1]
  %487 = vmatprep.subr.mxu0 0.0
  %488 = vmatpush1.msra.mxu0 %v42
  %489 = vmatprep.subr.mxu0 0.0
  %490 = vmatpush1.msra.mxu0 %v43
  %491 = vmatprep.subr.mxu0 0.0
  %492 = vmatpush1.msra.mxu0 %v44
  %493 = vmatprep.subr.mxu0 0.0
  %494 = vmatpush1.msra.mxu0 %v45
  %495 = vmatprep.subr.mxu0 0.0
  %496 = vmatpush1.msra.mxu0 %v46
  %497 = vmatprep.subr.mxu0 0.0
  %498 = vmatpush1.msra.mxu0 %v47
  %499 = vmatprep.subr.mxu0 0.0
  %500 = vmatpush1.msra.mxu0 %v48
  %501 = vmatprep.subr.mxu0 0.0
  %502 = vmatpush1.msra.mxu0 %v49
  %503 = vmatprep.subr.mxu0 0.0
  %504 = vmatpush1.msra.mxu0 %v50
  %505 = vmatprep.subr.mxu0 0.0
  %506 = vmatpush1.msra.mxu0 %v51
  %507 = vmatprep.subr.mxu0 0.0
  %508 = vmatpush1.msra.mxu0 %v52
  %509 = vmatprep.subr.mxu0 0.0
  %510 = vmatpush1.msra.mxu0 %v53
  %511 = vmatprep.subr.mxu0 0.0
  %512 = vmatpush1.msra.mxu0 %v54
  %513 = vmatprep.subr.mxu0 0.0
  %514 = vmatpush1.msra.mxu0 %v55
  %515 = vmatprep.subr.mxu0 0.0
  %516 = vmatpush1.msra.mxu0 %v56
  %517 = vmatprep.subr.mxu0 0.0
  %518 = vmatpush1.msra.mxu0 %v57
  %519 = vmatprep.subr.mxu0 0.0
  %520 = vmatpush1.msra.mxu0 0.0
  %521 = vmatprep.subr.mxu0 0.0
  %522 = vmatpush1.msra.mxu0 0.0
  %523 = vmatprep.subr.mxu0 0.0
  %524 = vmatpush1.msra.mxu0 0.0
  %525 = vmatprep.subr.mxu0 0.0
  %526 = vmatpush1.msra.mxu0 0.0
  %527 = vmatprep.subr.mxu0 0.0
  %528 = vmatpush1.msra.mxu0 0.0
  %529 = vmatprep.subr.mxu0 0.0
  %530 = vmatpush1.msra.mxu0 0.0
  %531 = vmatprep.subr.mxu0 0.0
  %532 = vmatpush1.msra.mxu0 0.0
  %533 = vmatprep.subr.mxu0 0.0
  %534 = vmatpush1.msra.mxu0 0.0
  %535 = vmatprep.subr.mxu0 0.0
  %536 = vmatpush1.msra.mxu0 0.0
  %537 = vmatprep.subr.mxu0 0.0
  %538 = vmatpush1.msra.mxu0 0.0
  %539 = vmatprep.subr.mxu0 0.0
  %540 = vmatpush1.msra.mxu0 0.0
  %541 = vmatprep.subr.mxu0 0.0
  %542 = vmatpush1.msra.mxu0 0.0
  %543 = vmatprep.subr.mxu0 0.0
  %544 = vmatpush1.msra.mxu0 0.0
  %545 = vmatprep.subr.mxu0 0.0
  %546 = vmatpush1.msra.mxu0 0.0
  %547 = vmatprep.subr.mxu0 0.0
  %548 = vmatpush1.msra.mxu0 0.0
  %549 = vmatprep.subr.mxu0 0.0
  %550 = vmatpush1.msra.mxu0 0.0
  %551 = vmatprep.mubr.f32.mxu0 0.0
  %552 = vmatmul.mubr.f32.gmra.mrb[0].mxu0 %v481
  %v553 = vpop.f32.mrb[0].mxu0
  %v554 = vadd.f32 0.0, %v553
  %v555 = vpop.f32.mrb[0].mxu0
  %556 = vmatprep.mubr.f32.mxu0 0.0
  %557 = vmatmul.mubr.f32.gmra.mrb[0].mxu0 %v482
  %v558 = vpop.f32.mrb[0].mxu0
  %v559 = vadd.f32 0.0, %v558
  %v560 = vpop.f32.mrb[0].mxu0
  %561 = vmatprep.mubr.f32.mxu0 0.0
  %562 = vmatmul.mubr.f32.gmra.mrb[0].mxu0 %v483
  %v563 = vpop.f32.mrb[0].mxu0
  %v564 = vadd.f32 0.0, %v563
  %v565 = vpop.f32.mrb[0].mxu0
  %566 = vmatprep.mubr.f32.mxu0 0.0
  %567 = vmatmul.mubr.f32.gmra.mrb[0].mxu0 %v484
  %v568 = vpop.f32.mrb[0].mxu0
  %v569 = vadd.f32 0.0, %v568
  %v570 = vpop.f32.mrb[0].mxu0
  %571 = vdwg.mxu0
  %v572 = vadd.f32 %v554, %v559
  %v573 = vadd.f32 %v572, %v564
  %v574 = vadd.f32 %v573, %v569
  %v575 = vrot.slane %v574, 4
  %v576 = vadd.f32 %v574, %v575
  %v577 = vrot.slane %v576, 2
  %v578 = vadd.f32 %v576, %v577
  %v579 = vrot.slane %v578, 1
  %v580 = vadd.f32 %v578, %v579
  %v581 = vmul.f32 %v580, 0.001953125
  %v582 = vsub.f32 %v481, %v581
  %v583 = vsub.f32 %v482, %v581
  %v584 = vsub.f32 %v483, %v581
  %v585 = vsub.f32 %v484, %v581
  %v586 = vmul.f32 %v582, %v582
  %v587 = vmul.f32 %v583, %v583
  %v588 = vmul.f32 %v584, %v584
  %v589 = vmul.f32 %v585, %v585
  %590 = vmatprep.subr.mxu0 0.0
  %591 = vmatpush1.msra.mxu0 %v42
  %592 = vmatprep.subr.mxu0 0.0
  %593 = vmatpush1.msra.mxu0 %v43
  %594 = vmatprep.subr.mxu0 0.0
  %595 = vmatpush1.msra.mxu0 %v44
  %596 = vmatprep.subr.mxu0 0.0
  %597 = vmatpush1.msra.mxu0 %v45
  %598 = vmatprep.subr.mxu0 0.0
  %599 = vmatpush1.msra.mxu0 %v46
  %600 = vmatprep.subr.mxu0 0.0
  %601 = vmatpush1.msra.mxu0 %v47
  %602 = vmatprep.subr.mxu0 0.0
  %603 = vmatpush1.msra.mxu0 %v48
  %604 = vmatprep.subr.mxu0 0.0
  %605 = vmatpush1.msra.mxu0 %v49
  %606 = vmatprep.subr.mxu0 0.0
  %607 = vmatpush1.msra.mxu0 %v50
  %608 = vmatprep.subr.mxu0 0.0
  %609 = vmatpush1.msra.mxu0 %v51
  %610 = vmatprep.subr.mxu0 0.0
  %611 = vmatpush1.msra.mxu0 %v52
  %612 = vmatprep.subr.mxu0 0.0
  %613 = vmatpush1.msra.mxu0 %v53
  %614 = vmatprep.subr.mxu0 0.0
  %615 = vmatpush1.msra.mxu0 %v54
  %616 = vmatprep.subr.mxu0 0.0
  %617 = vmatpush1.msra.mxu0 %v55
  %618 = vmatprep.subr.mxu0 0.0
  %619 = vmatpush1.msra.mxu0 %v56
  %620 = vmatprep.subr.mxu0 0.0
  %621 = vmatpush1.msra.mxu0 %v57
  %622 = vmatprep.subr.mxu0 0.0
  %623 = vmatpush1.msra.mxu0 0.0
  %624 = vmatprep.subr.mxu0 0.0
  %625 = vmatpush1.msra.mxu0 0.0
  %626 = vmatprep.subr.mxu0 0.0
  %627 = vmatpush1.msra.mxu0 0.0
  %628 = vmatprep.subr.mxu0 0.0
  %629 = vmatpush1.msra.mxu0 0.0
  %630 = vmatprep.subr.mxu0 0.0
  %631 = vmatpush1.msra.mxu0 0.0
  %632 = vmatprep.subr.mxu0 0.0
  %633 = vmatpush1.msra.mxu0 0.0
  %634 = vmatprep.subr.mxu0 0.0
  %635 = vmatpush1.msra.mxu0 0.0
  %636 = vmatprep.subr.mxu0 0.0
  %637 = vmatpush1.msra.mxu0 0.0
  %638 = vmatprep.subr.mxu0 0.0
  %639 = vmatpush1.msra.mxu0 0.0
  %640 = vmatprep.subr.mxu0 0.0
  %641 = vmatpush1.msra.mxu0 0.0
  %642 = vmatprep.subr.mxu0 0.0
  %643 = vmatpush1.msra.mxu0 0.0
  %644 = vmatprep.subr.mxu0 0.0
  %645 = vmatpush1.msra.mxu0 0.0
  %646 = vmatprep.subr.mxu0 0.0
  %647 = vmatpush1.msra.mxu0 0.0
  %648 = vmatprep.subr.mxu0 0.0
  %649 = vmatpush1.msra.mxu0 0.0
  %650 = vmatprep.subr.mxu0 0.0
  %651 = vmatpush1.msra.mxu0 0.0
  %652 = vmatprep.subr.mxu0 0.0
  %653 = vmatpush1.msra.mxu0 0.0
  %654 = vmatprep.mubr.f32.mxu0 0.0
  %655 = vmatmul.mubr.f32.gmra.mrb[0].mxu0 %v586
  %v656 = vpop.f32.mrb[0].mxu0
  %v657 = vadd.f32 0.0, %v656
  %v658 = vpop.f32.mrb[0].mxu0
  %659 = vmatprep.mubr.f32.mxu0 0.0
  %660 = vmatmul.mubr.f32.gmra.mrb[0].mxu0 %v587
  %v661 = vpop.f32.mrb[0].mxu0
  %v662 = vadd.f32 0.0, %v661
  %v663 = vpop.f32.mrb[0].mxu0
  %664 = vmatprep.mubr.f32.mxu0 0.0
  %665 = vmatmul.mubr.f32.gmra.mrb[0].mxu0 %v588
  %v666 = vpop.f32.mrb[0].mxu0
  %v667 = vadd.f32 0.0, %v666
  %v668 = vpop.f32.mrb[0].mxu0
  %669 = vmatprep.mubr.f32.mxu0 0.0
  %670 = vmatmul.mubr.f32.gmra.mrb[0].mxu0 %v589
  %v671 = vpop.f32.mrb[0].mxu0
  %v672 = vadd.f32 0.0, %v671
  %v673 = vpop.f32.mrb[0].mxu0
  %674 = vdwg.mxu0
  %v675 = vadd.f32 %v657, %v662
  %v676 = vadd.f32 %v675, %v667
  %v677 = vadd.f32 %v676, %v672
  %v678 = vrot.slane %v677, 4
  %v679 = vadd.f32 %v677, %v678
  %v680 = vrot.slane %v679, 2
  %v681 = vadd.f32 %v679, %v680
  %v682 = vrot.slane %v681, 1
  %v683 = vadd.f32 %v681, %v682
  %v684 = vmul.f32 %v683, 0.001953125
  %v685 = vadd.f32 %v684, 1e-05
  %v686 = vrsqrt.pop %v685
  %v687 = vmul.f32 %v686, %v485
  %v688 = vlaneseq
  %v689 = vshrl.u32 %v688, 7
  %v690 = vsub.s32 0, %v689
  %v691 = vrot.slane %v687, %v690
  %v692 = vmul.f32 %v582, %v691
  %v693 = vmul.f32 %v583, %v691
  %v694 = vmul.f32 %v584, %v691
  %v695 = vmul.f32 %v585, %v691
  %v697 = vlaneseq
  %v698 = vshrl.u32 %v697, 7
  %v699 = vsub.s32 0, %v698
  %v700 = vrot.slane %v486, %v699
  %v702 = vadd.f32 %v692, %v700
  %v703 = vadd.f32 %v693, %v700
  %v704 = vadd.f32 %v694, %v700
  %v705 = vadd.f32 %v695, %v700
  %v706 = vmax.f32 %v702, 0.0
  %v707 = vmax.f32 %v703, 0.0
  %v708 = vmax.f32 %v704, 0.0
  %v709 = vmax.f32 %v705, 0.0
  %v710 = vrot.slane %v706, 7
  %v711 = vrot.slane %v707, 7
  %v712 = vrot.slane %v708, 7
  %v713 = vrot.slane %v709, 7
  %v714 = vsel %vm72, %v712, %v713
  %v715 = vsel %vm72, %v711, %v712
  %v716 = vsel %vm72, %v710, %v711
  %v717 = vsel %vm72, %v713, %v710
  %v718 = vmul.f32 %v717, %v80
  %v719 = vmul.f32 %v716, %v85
  %v720 = vmul.f32 %v715, %v90
  %v721 = vmul.f32 %v714, %v95
  %v722 = vpack.c.bf16 %v719, %v718
  %v723 = vpack.c.bf16 %v721, %v720
  %v724 = vld [vmem:[%s2] sm:$0xf]
  %v725 = vld [vmem:[%s2 + $0x4] sm:$0xf]
  %v726 = vld [vmem:[%s2 + $0x8] sm:$0xf]
  %v727 = vld [vmem:[%s2 + $0xc] sm:$0xf]
  %v728 = vld [vmem:[%s2 + $0x10] sm:$0xf]
  %v729 = vld [vmem:[%s2 + $0x14] sm:$0xf]
  %v730 = vld [vmem:[%s2 + $0x18] sm:$0xf]
  %v731 = vld [vmem:[%s2 + $0x1c] sm:$0xf]
  %v732 = vld [vmem:[%s2 + $0x20] sm:$0xf]
  %v733 = vld [vmem:[%s2 + $0x24] sm:$0xf]
  %v734 = vld [vmem:[%s2 + $0x28] sm:$0xf]
  %v735 = vld [vmem:[%s2 + $0x2c] sm:$0xf]
  %v736 = vld [vmem:[%s2 + $0x30] sm:$0xf]
  %v737 = vld [vmem:[%s2 + $0x34] sm:$0xf]
  %v738 = vld [vmem:[%s2 + $0x38] sm:$0xf]
  %v739 = vld [vmem:[%s2 + $0x3c] sm:$0xf]
  %v740 = vpack.c.bf16 %v707, %v706
  %v741 = vpack.c.bf16 %v709, %v708
  %s742 = scalar_lea.vmem %s2, 64
  %v743 = vld [vmem:[%s742] sm:$0xf]
  %v744 = vld [vmem:[%s742 + $0x4] sm:$0xf]
  %v745 = vld [vmem:[%s742 + $0x8] sm:$0xf]
  %v746 = vld [vmem:[%s742 + $0xc] sm:$0xf]
  %v747 = vld [vmem:[%s742 + $0x10] sm:$0xf]
  %v748 = vld [vmem:[%s742 + $0x14] sm:$0xf]
  %v749 = vld [vmem:[%s742 + $0x18] sm:$0xf]
  %v750 = vld [vmem:[%s742 + $0x1c] sm:$0xf]
  %v751 = vld [vmem:[%s742 + $0x20] sm:$0xf]
  %v752 = vld [vmem:[%s742 + $0x24] sm:$0xf]
  %v753 = vld [vmem:[%s742 + $0x28] sm:$0xf]
  %v754 = vld [vmem:[%s742 + $0x2c] sm:$0xf]
  %v755 = vld [vmem:[%s742 + $0x30] sm:$0xf]
  %v756 = vld [vmem:[%s742 + $0x34] sm:$0xf]
  %v757 = vld [vmem:[%s742 + $0x38] sm:$0xf]
  %v758 = vld [vmem:[%s742 + $0x3c] sm:$0xf]
  %v775 = vunpack.c.l.b16 %v743
  %v776 = vunpack.c.l.b16 %v744
  %v777 = vunpack.c.l.b16 %v745
  %v778 = vunpack.c.l.b16 %v746
  %v779 = vunpack.c.l.b16 %v747
  %v780 = vunpack.c.l.b16 %v748
  %v781 = vunpack.c.l.b16 %v749
  %v782 = vunpack.c.l.b16 %v750
  %v783 = vunpack.c.l.b16 %v751
  %v784 = vunpack.c.l.b16 %v752
  %v785 = vunpack.c.l.b16 %v753
  %v786 = vunpack.c.l.b16 %v754
  %v787 = vunpack.c.l.b16 %v755
  %v788 = vunpack.c.l.b16 %v756
  %v789 = vunpack.c.l.b16 %v757
  %v790 = vunpack.c.l.b16 %v758
  %v791 = vpack.c.b16 %v776, %v775
  %v792 = vpack.c.b16 %v778, %v777
  %v793 = vpack.c.b16 %v780, %v779
  %v794 = vpack.c.b16 %v782, %v781
  %v795 = vpack.c.b16 %v784, %v783
  %v796 = vpack.c.b16 %v786, %v785
  %v797 = vpack.c.b16 %v788, %v787
  %v798 = vpack.c.b16 %v790, %v789
  %807 = vmatprep.subr.bf16.mxu0 0
  %808 = vmatpush1.bf16.msra.mxu0 %v791
  %809 = vmatprep.subr.bf16.mxu0 0
  %810 = vmatpush1.bf16.msra.mxu0 %v792
  %811 = vmatprep.subr.bf16.mxu0 0
  %812 = vmatpush1.bf16.msra.mxu0 %v793
  %813 = vmatprep.subr.bf16.mxu0 0
  %814 = vmatpush1.bf16.msra.mxu0 %v794
  %815 = vmatprep.subr.bf16.mxu0 0
  %816 = vmatpush1.bf16.msra.mxu0 %v795
  %817 = vmatprep.subr.bf16.mxu0 0
  %818 = vmatpush1.bf16.msra.mxu0 %v796
  %819 = vmatprep.subr.bf16.mxu0 0
  %820 = vmatpush1.bf16.msra.mxu0 %v797
  %821 = vmatprep.subr.bf16.mxu0 0
  %822 = vmatpush1.bf16.msra.mxu0 %v798
  %823 = vmatprep.subr.bf16.mxu0 0
  %824 = vmatpush1.bf16.msra.mxu0 0
  %825 = vmatprep.subr.bf16.mxu0 0
  %826 = vmatpush1.bf16.msra.mxu0 0
  %827 = vmatprep.subr.bf16.mxu0 0
  %828 = vmatpush1.bf16.msra.mxu0 0
  %829 = vmatprep.subr.bf16.mxu0 0
  %830 = vmatpush1.bf16.msra.mxu0 0
  %831 = vmatprep.subr.bf16.mxu0 0
  %832 = vmatpush1.bf16.msra.mxu0 0
  %833 = vmatprep.subr.bf16.mxu0 0
  %834 = vmatpush1.bf16.msra.mxu0 0
  %835 = vmatprep.subr.bf16.mxu0 0
  %836 = vmatpush1.bf16.msra.mxu0 0
  %837 = vmatprep.subr.bf16.mxu0 0
  %838 = vmatpush1.bf16.msra.mxu0 0
  %839 = vmatprep.mubr.bf16.mxu0 0
  %840 = vmatmul.mubr.bf16.gmra.mrb[0].mxu0 %v740
  %v841 = vpop.f32.mrb[0].mxu0
  %v842 = vadd.f32 0.0, %v841
  %v843 = vpop.f32.mrb[0].mxu0
  %v844 = vpop.f32.mrb[0].mxu0
  %v845 = vadd.f32 0.0, %v844
  %v846 = vpop.f32.mrb[0].mxu0
  %847 = vmatprep.mubr.bf16.mxu0 0
  %848 = vmatmul.mubr.bf16.gmra.mrb[0].mxu0 %v741
  %v849 = vpop.f32.mrb[0].mxu0
  %v850 = vadd.f32 0.0, %v849
  %v851 = vpop.f32.mrb[0].mxu0
  %v852 = vpop.f32.mrb[0].mxu0
  %v853 = vadd.f32 0.0, %v852
  %v854 = vpop.f32.mrb[0].mxu0
  %855 = vdwg.mxu0
  %v872 = vunpack.c.l.b16 %v724
  %v873 = vunpack.c.l.b16 %v725
  %v874 = vunpack.c.l.b16 %v726
  %v875 = vunpack.c.l.b16 %v727
  %v876 = vunpack.c.l.b16 %v728
  %v877 = vunpack.c.l.b16 %v729
  %v878 = vunpack.c.l.b16 %v730
  %v879 = vunpack.c.l.b16 %v731
  %v880 = vunpack.c.l.b16 %v732
  %v881 = vunpack.c.l.b16 %v733
  %v882 = vunpack.c.l.b16 %v734
  %v883 = vunpack.c.l.b16 %v735
  %v884 = vunpack.c.l.b16 %v736
  %v885 = vunpack.c.l.b16 %v737
  %v886 = vunpack.c.l.b16 %v738
  %v887 = vunpack.c.l.b16 %v739
  %v888 = vpack.c.b16 %v873, %v872
  %v889 = vpack.c.b16 %v875, %v874
  %v890 = vpack.c.b16 %v877, %v876
  %v891 = vpack.c.b16 %v879, %v878
  %v892 = vpack.c.b16 %v881, %v880
  %v893 = vpack.c.b16 %v883, %v882
  %v894 = vpack.c.b16 %v885, %v884
  %v895 = vpack.c.b16 %v887, %v886
  %904 = vmatprep.subr.bf16.mxu0 0
  %905 = vmatpush1.bf16.msra.mxu0 %v888
  %906 = vmatprep.subr.bf16.mxu0 0
  %907 = vmatpush1.bf16.msra.mxu0 %v889
  %908 = vmatprep.subr.bf16.mxu0 0
  %909 = vmatpush1.bf16.msra.mxu0 %v890
  %910 = vmatprep.subr.bf16.mxu0 0
  %911 = vmatpush1.bf16.msra.mxu0 %v891
  %912 = vmatprep.subr.bf16.mxu0 0
  %913 = vmatpush1.bf16.msra.mxu0 %v892
  %914 = vmatprep.subr.bf16.mxu0 0
  %915 = vmatpush1.bf16.msra.mxu0 %v893
  %916 = vmatprep.subr.bf16.mxu0 0
  %917 = vmatpush1.bf16.msra.mxu0 %v894
  %918 = vmatprep.subr.bf16.mxu0 0
  %919 = vmatpush1.bf16.msra.mxu0 %v895
  %920 = vmatprep.subr.bf16.mxu0 0
  %921 = vmatpush1.bf16.msra.mxu0 0
  %922 = vmatprep.subr.bf16.mxu0 0
  %923 = vmatpush1.bf16.msra.mxu0 0
  %924 = vmatprep.subr.bf16.mxu0 0
  %925 = vmatpush1.bf16.msra.mxu0 0
  %926 = vmatprep.subr.bf16.mxu0 0
  %927 = vmatpush1.bf16.msra.mxu0 0
  %928 = vmatprep.subr.bf16.mxu0 0
  %929 = vmatpush1.bf16.msra.mxu0 0
  %930 = vmatprep.subr.bf16.mxu0 0
  %931 = vmatpush1.bf16.msra.mxu0 0
  %932 = vmatprep.subr.bf16.mxu0 0
  %933 = vmatpush1.bf16.msra.mxu0 0
  %934 = vmatprep.subr.bf16.mxu0 0
  %935 = vmatpush1.bf16.msra.mxu0 0
  %936 = vmatprep.mubr.bf16.mxu0 0
  %937 = vmatmul.mubr.bf16.gmra.mrb[0].mxu0 %v722
  %v938 = vpop.f32.mrb[0].mxu0
  %v939 = vadd.f32 %v842, %v938
  %v940 = vpop.f32.mrb[0].mxu0
  %v941 = vpop.f32.mrb[0].mxu0
  %v942 = vadd.f32 %v845, %v941
  %v943 = vpop.f32.mrb[0].mxu0
  %944 = vmatprep.mubr.bf16.mxu0 0
  %945 = vmatmul.mubr.bf16.gmra.mrb[0].mxu0 %v723
  %v946 = vpop.f32.mrb[0].mxu0
  %v947 = vadd.f32 %v850, %v946
  %v948 = vpop.f32.mrb[0].mxu0
  %v949 = vpop.f32.mrb[0].mxu0
  %v950 = vadd.f32 %v853, %v949
  %v951 = vpop.f32.mrb[0].mxu0
  %952 = vdwg.mxu0
  %v953 = vrot.slane %v706, 1
  %v954 = vrot.slane %v707, 1
  %v955 = vrot.slane %v708, 1
  %v956 = vrot.slane %v709, 1
  %v957 = vsel %vm336, %v955, %v956
  %v958 = vsel %vm336, %v954, %v955
  %v959 = vsel %vm336, %v953, %v954
  %v960 = vsel %vm336, %v956, %v953
  %v961 = vmul.f32 %v959, %v344
  %v962 = vmul.f32 %v958, %v349
  %v963 = vmul.f32 %v957, %v354
  %v964 = vmul.f32 %v960, %v359
  %v965 = vpack.c.bf16 %v962, %v961
  %v966 = vpack.c.bf16 %v964, %v963
  %s967 = scalar_lea.vmem %s2, 128
  %v968 = vld [vmem:[%s967] sm:$0xf]
  %v969 = vld [vmem:[%s967 + $0x4] sm:$0xf]
  %v970 = vld [vmem:[%s967 + $0x8] sm:$0xf]
  %v971 = vld [vmem:[%s967 + $0xc] sm:$0xf]
  %v972 = vld [vmem:[%s967 + $0x10] sm:$0xf]
  %v973 = vld [vmem:[%s967 + $0x14] sm:$0xf]
  %v974 = vld [vmem:[%s967 + $0x18] sm:$0xf]
  %v975 = vld [vmem:[%s967 + $0x1c] sm:$0xf]
  %v976 = vld [vmem:[%s967 + $0x20] sm:$0xf]
  %v977 = vld [vmem:[%s967 + $0x24] sm:$0xf]
  %v978 = vld [vmem:[%s967 + $0x28] sm:$0xf]
  %v979 = vld [vmem:[%s967 + $0x2c] sm:$0xf]
  %v980 = vld [vmem:[%s967 + $0x30] sm:$0xf]
  %v981 = vld [vmem:[%s967 + $0x34] sm:$0xf]
  %v982 = vld [vmem:[%s967 + $0x38] sm:$0xf]
  %v983 = vld [vmem:[%s967 + $0x3c] sm:$0xf]
  %v1000 = vunpack.c.l.b16 %v968
  %v1001 = vunpack.c.l.b16 %v969
  %v1002 = vunpack.c.l.b16 %v970
  %v1003 = vunpack.c.l.b16 %v971
  %v1004 = vunpack.c.l.b16 %v972
  %v1005 = vunpack.c.l.b16 %v973
  %v1006 = vunpack.c.l.b16 %v974
  %v1007 = vunpack.c.l.b16 %v975
  %v1008 = vunpack.c.l.b16 %v976
  %v1009 = vunpack.c.l.b16 %v977
  %v1010 = vunpack.c.l.b16 %v978
  %v1011 = vunpack.c.l.b16 %v979
  %v1012 = vunpack.c.l.b16 %v980
  %v1013 = vunpack.c.l.b16 %v981
  %v1014 = vunpack.c.l.b16 %v982
  %v1015 = vunpack.c.l.b16 %v983
  %v1016 = vpack.c.b16 %v1001, %v1000
  %v1017 = vpack.c.b16 %v1003, %v1002
  %v1018 = vpack.c.b16 %v1005, %v1004
  %v1019 = vpack.c.b16 %v1007, %v1006
  %v1020 = vpack.c.b16 %v1009, %v1008
  %v1021 = vpack.c.b16 %v1011, %v1010
  %v1022 = vpack.c.b16 %v1013, %v1012
  %v1023 = vpack.c.b16 %v1015, %v1014
  %1032 = vmatprep.subr.bf16.mxu0 0
  %1033 = vmatpush1.bf16.msra.mxu0 %v1016
  %1034 = vmatprep.subr.bf16.mxu0 0
  %1035 = vmatpush1.bf16.msra.mxu0 %v1017
  %1036 = vmatprep.subr.bf16.mxu0 0
  %1037 = vmatpush1.bf16.msra.mxu0 %v1018
  %1038 = vmatprep.subr.bf16.mxu0 0
  %1039 = vmatpush1.bf16.msra.mxu0 %v1019
  %1040 = vmatprep.subr.bf16.mxu0 0
  %1041 = vmatpush1.bf16.msra.mxu0 %v1020
  %1042 = vmatprep.subr.bf16.mxu0 0
  %1043 = vmatpush1.bf16.msra.mxu0 %v1021
  %1044 = vmatprep.subr.bf16.mxu0 0
  %1045 = vmatpush1.bf16.msra.mxu0 %v1022
  %1046 = vmatprep.subr.bf16.mxu0 0
  %1047 = vmatpush1.bf16.msra.mxu0 %v1023
  %1048 = vmatprep.subr.bf16.mxu0 0
  %1049 = vmatpush1.bf16.msra.mxu0 0
  %1050 = vmatprep.subr.bf16.mxu0 0
  %1051 = vmatpush1.bf16.msra.mxu0 0
  %1052 = vmatprep.subr.bf16.mxu0 0
  %1053 = vmatpush1.bf16.msra.mxu0 0
  %1054 = vmatprep.subr.bf16.mxu0 0
  %1055 = vmatpush1.bf16.msra.mxu0 0
  %1056 = vmatprep.subr.bf16.mxu0 0
  %1057 = vmatpush1.bf16.msra.mxu0 0
  %1058 = vmatprep.subr.bf16.mxu0 0
  %1059 = vmatpush1.bf16.msra.mxu0 0
  %1060 = vmatprep.subr.bf16.mxu0 0
  %1061 = vmatpush1.bf16.msra.mxu0 0
  %1062 = vmatprep.subr.bf16.mxu0 0
  %1063 = vmatpush1.bf16.msra.mxu0 0
  %1064 = vmatprep.mubr.bf16.mxu0 0
  %1065 = vmatmul.mubr.bf16.gmra.mrb[0].mxu0 %v965
  %v1066 = vpop.f32.mrb[0].mxu0
  %v1067 = vadd.f32 0.0, %v1066
  %v1068 = vpop.f32.mrb[0].mxu0
  %v1069 = vpop.f32.mrb[0].mxu0
  %v1070 = vadd.f32 0.0, %v1069
  %v1071 = vpop.f32.mrb[0].mxu0
  %1072 = vmatprep.mubr.bf16.mxu0 0
  %1073 = vmatmul.mubr.bf16.gmra.mrb[0].mxu0 %v966
  %v1074 = vpop.f32.mrb[0].mxu0
  %v1075 = vadd.f32 0.0, %v1074
  %v1076 = vpop.f32.mrb[0].mxu0
  %v1077 = vpop.f32.mrb[0].mxu0
  %v1078 = vadd.f32 0.0, %v1077
  %v1079 = vpop.f32.mrb[0].mxu0
  %1080 = vdwg.mxu0
  %v1081 = vadd.f32 %v939, %v1067
  %v1082 = vadd.f32 %v942, %v1070
  %v1083 = vadd.f32 %v947, %v1075
  %v1084 = vadd.f32 %v950, %v1078
  %v1085 = vld [vmem:[%s5] sm:$0x1]
  %v1086 = vld [vmem:[%s6] sm:$0x1]
  %1087 = vmatprep.subr.mxu0 0.0
  %1088 = vmatpush1.msra.mxu0 %v42
  %1089 = vmatprep.subr.mxu0 0.0
  %1090 = vmatpush1.msra.mxu0 %v43
  %1091 = vmatprep.subr.mxu0 0.0
  %1092 = vmatpush1.msra.mxu0 %v44
  %1093 = vmatprep.subr.mxu0 0.0
  %1094 = vmatpush1.msra.mxu0 %v45
  %1095 = vmatprep.subr.mxu0 0.0
  %1096 = vmatpush1.msra.mxu0 %v46
  %1097 = vmatprep.subr.mxu0 0.0
  %1098 = vmatpush1.msra.mxu0 %v47
  %1099 = vmatprep.subr.mxu0 0.0
  %1100 = vmatpush1.msra.mxu0 %v48
  %1101 = vmatprep.subr.mxu0 0.0
  %1102 = vmatpush1.msra.mxu0 %v49
  %1103 = vmatprep.subr.mxu0 0.0
  %1104 = vmatpush1.msra.mxu0 %v50
  %1105 = vmatprep.subr.mxu0 0.0
  %1106 = vmatpush1.msra.mxu0 %v51
  %1107 = vmatprep.subr.mxu0 0.0
  %1108 = vmatpush1.msra.mxu0 %v52
  %1109 = vmatprep.subr.mxu0 0.0
  %1110 = vmatpush1.msra.mxu0 %v53
  %1111 = vmatprep.subr.mxu0 0.0
  %1112 = vmatpush1.msra.mxu0 %v54
  %1113 = vmatprep.subr.mxu0 0.0
  %1114 = vmatpush1.msra.mxu0 %v55
  %1115 = vmatprep.subr.mxu0 0.0
  %1116 = vmatpush1.msra.mxu0 %v56
  %1117 = vmatprep.subr.mxu0 0.0
  %1118 = vmatpush1.msra.mxu0 %v57
  %1119 = vmatprep.subr.mxu0 0.0
  %1120 = vmatpush1.msra.mxu0 0.0
  %1121 = vmatprep.subr.mxu0 0.0
  %1122 = vmatpush1.msra.mxu0 0.0
  %1123 = vmatprep.subr.mxu0 0.0
  %1124 = vmatpush1.msra.mxu0 0.0
  %1125 = vmatprep.subr.mxu0 0.0
  %1126 = vmatpush1.msra.mxu0 0.0
  %1127 = vmatprep.subr.mxu0 0.0
  %1128 = vmatpush1.msra.mxu0 0.0
  %1129 = vmatprep.subr.mxu0 0.0
  %1130 = vmatpush1.msra.mxu0 0.0
  %1131 = vmatprep.subr.mxu0 0.0
  %1132 = vmatpush1.msra.mxu0 0.0
  %1133 = vmatprep.subr.mxu0 0.0
  %1134 = vmatpush1.msra.mxu0 0.0
  %1135 = vmatprep.subr.mxu0 0.0
  %1136 = vmatpush1.msra.mxu0 0.0
  %1137 = vmatprep.subr.mxu0 0.0
  %1138 = vmatpush1.msra.mxu0 0.0
  %1139 = vmatprep.subr.mxu0 0.0
  %1140 = vmatpush1.msra.mxu0 0.0
  %1141 = vmatprep.subr.mxu0 0.0
  %1142 = vmatpush1.msra.mxu0 0.0
  %1143 = vmatprep.subr.mxu0 0.0
  %1144 = vmatpush1.msra.mxu0 0.0
  %1145 = vmatprep.subr.mxu0 0.0
  %1146 = vmatpush1.msra.mxu0 0.0
  %1147 = vmatprep.subr.mxu0 0.0
  %1148 = vmatpush1.msra.mxu0 0.0
  %1149 = vmatprep.subr.mxu0 0.0
  %1150 = vmatpush1.msra.mxu0 0.0
  %1151 = vmatprep.mubr.f32.mxu0 0.0
  %1152 = vmatmul.mubr.f32.gmra.mrb[0].mxu0 %v1081
  %v1153 = vpop.f32.mrb[0].mxu0
  %v1154 = vadd.f32 0.0, %v1153
  %v1155 = vpop.f32.mrb[0].mxu0
  %1156 = vmatprep.mubr.f32.mxu0 0.0
  %1157 = vmatmul.mubr.f32.gmra.mrb[0].mxu0 %v1082
  %v1158 = vpop.f32.mrb[0].mxu0
  %v1159 = vadd.f32 0.0, %v1158
  %v1160 = vpop.f32.mrb[0].mxu0
  %1161 = vmatprep.mubr.f32.mxu0 0.0
  %1162 = vmatmul.mubr.f32.gmra.mrb[0].mxu0 %v1083
  %v1163 = vpop.f32.mrb[0].mxu0
  %v1164 = vadd.f32 0.0, %v1163
  %v1165 = vpop.f32.mrb[0].mxu0
  %1166 = vmatprep.mubr.f32.mxu0 0.0
  %1167 = vmatmul.mubr.f32.gmra.mrb[0].mxu0 %v1084
  %v1168 = vpop.f32.mrb[0].mxu0
  %v1169 = vadd.f32 0.0, %v1168
  %v1170 = vpop.f32.mrb[0].mxu0
  %1171 = vdwg.mxu0
  %v1172 = vadd.f32 %v1154, %v1159
  %v1173 = vadd.f32 %v1172, %v1164
  %v1174 = vadd.f32 %v1173, %v1169
  %v1175 = vrot.slane %v1174, 4
  %v1176 = vadd.f32 %v1174, %v1175
  %v1177 = vrot.slane %v1176, 2
  %v1178 = vadd.f32 %v1176, %v1177
  %v1179 = vrot.slane %v1178, 1
  %v1180 = vadd.f32 %v1178, %v1179
  %v1181 = vmul.f32 %v1180, 0.001953125
  %v1182 = vsub.f32 %v1081, %v1181
  %v1183 = vsub.f32 %v1082, %v1181
  %v1184 = vsub.f32 %v1083, %v1181
  %v1185 = vsub.f32 %v1084, %v1181
  %v1186 = vmul.f32 %v1182, %v1182
  %v1187 = vmul.f32 %v1183, %v1183
  %v1188 = vmul.f32 %v1184, %v1184
  %v1189 = vmul.f32 %v1185, %v1185
  %1190 = vmatprep.subr.mxu0 0.0
  %1191 = vmatpush1.msra.mxu0 %v42
  %1192 = vmatprep.subr.mxu0 0.0
  %1193 = vmatpush1.msra.mxu0 %v43
  %1194 = vmatprep.subr.mxu0 0.0
  %1195 = vmatpush1.msra.mxu0 %v44
  %1196 = vmatprep.subr.mxu0 0.0
  %1197 = vmatpush1.msra.mxu0 %v45
  %1198 = vmatprep.subr.mxu0 0.0
  %1199 = vmatpush1.msra.mxu0 %v46
  %1200 = vmatprep.subr.mxu0 0.0
  %1201 = vmatpush1.msra.mxu0 %v47
  %1202 = vmatprep.subr.mxu0 0.0
  %1203 = vmatpush1.msra.mxu0 %v48
  %1204 = vmatprep.subr.mxu0 0.0
  %1205 = vmatpush1.msra.mxu0 %v49
  %1206 = vmatprep.subr.mxu0 0.0
  %1207 = vmatpush1.msra.mxu0 %v50
  %1208 = vmatprep.subr.mxu0 0.0
  %1209 = vmatpush1.msra.mxu0 %v51
  %1210 = vmatprep.subr.mxu0 0.0
  %1211 = vmatpush1.msra.mxu0 %v52
  %1212 = vmatprep.subr.mxu0 0.0
  %1213 = vmatpush1.msra.mxu0 %v53
  %1214 = vmatprep.subr.mxu0 0.0
  %1215 = vmatpush1.msra.mxu0 %v54
  %1216 = vmatprep.subr.mxu0 0.0
  %1217 = vmatpush1.msra.mxu0 %v55
  %1218 = vmatprep.subr.mxu0 0.0
  %1219 = vmatpush1.msra.mxu0 %v56
  %1220 = vmatprep.subr.mxu0 0.0
  %1221 = vmatpush1.msra.mxu0 %v57
  %1222 = vmatprep.subr.mxu0 0.0
  %1223 = vmatpush1.msra.mxu0 0.0
  %1224 = vmatprep.subr.mxu0 0.0
  %1225 = vmatpush1.msra.mxu0 0.0
  %1226 = vmatprep.subr.mxu0 0.0
  %1227 = vmatpush1.msra.mxu0 0.0
  %1228 = vmatprep.subr.mxu0 0.0
  %1229 = vmatpush1.msra.mxu0 0.0
  %1230 = vmatprep.subr.mxu0 0.0
  %1231 = vmatpush1.msra.mxu0 0.0
  %1232 = vmatprep.subr.mxu0 0.0
  %1233 = vmatpush1.msra.mxu0 0.0
  %1234 = vmatprep.subr.mxu0 0.0
  %1235 = vmatpush1.msra.mxu0 0.0
  %1236 = vmatprep.subr.mxu0 0.0
  %1237 = vmatpush1.msra.mxu0 0.0
  %1238 = vmatprep.subr.mxu0 0.0
  %1239 = vmatpush1.msra.mxu0 0.0
  %1240 = vmatprep.subr.mxu0 0.0
  %1241 = vmatpush1.msra.mxu0 0.0
  %1242 = vmatprep.subr.mxu0 0.0
  %1243 = vmatpush1.msra.mxu0 0.0
  %1244 = vmatprep.subr.mxu0 0.0
  %1245 = vmatpush1.msra.mxu0 0.0
  %1246 = vmatprep.subr.mxu0 0.0
  %1247 = vmatpush1.msra.mxu0 0.0
  %1248 = vmatprep.subr.mxu0 0.0
  %1249 = vmatpush1.msra.mxu0 0.0
  %1250 = vmatprep.subr.mxu0 0.0
  %1251 = vmatpush1.msra.mxu0 0.0
  %1252 = vmatprep.subr.mxu0 0.0
  %1253 = vmatpush1.msra.mxu0 0.0
  %1254 = vmatprep.mubr.f32.mxu0 0.0
  %1255 = vmatmul.mubr.f32.gmra.mrb[0].mxu0 %v1186
  %v1256 = vpop.f32.mrb[0].mxu0
  %v1257 = vadd.f32 0.0, %v1256
  %v1258 = vpop.f32.mrb[0].mxu0
  %1259 = vmatprep.mubr.f32.mxu0 0.0
  %1260 = vmatmul.mubr.f32.gmra.mrb[0].mxu0 %v1187
  %v1261 = vpop.f32.mrb[0].mxu0
  %v1262 = vadd.f32 0.0, %v1261
  %v1263 = vpop.f32.mrb[0].mxu0
  %1264 = vmatprep.mubr.f32.mxu0 0.0
  %1265 = vmatmul.mubr.f32.gmra.mrb[0].mxu0 %v1188
  %v1266 = vpop.f32.mrb[0].mxu0
  %v1267 = vadd.f32 0.0, %v1266
  %v1268 = vpop.f32.mrb[0].mxu0
  %1269 = vmatprep.mubr.f32.mxu0 0.0
  %1270 = vmatmul.mubr.f32.gmra.mrb[0].mxu0 %v1189
  %v1271 = vpop.f32.mrb[0].mxu0
  %v1272 = vadd.f32 0.0, %v1271
  %v1273 = vpop.f32.mrb[0].mxu0
  %1274 = vdwg.mxu0
  %v1275 = vadd.f32 %v1257, %v1262
  %v1276 = vadd.f32 %v1275, %v1267
  %v1277 = vadd.f32 %v1276, %v1272
  %v1278 = vrot.slane %v1277, 4
  %v1279 = vadd.f32 %v1277, %v1278
  %v1280 = vrot.slane %v1279, 2
  %v1281 = vadd.f32 %v1279, %v1280
  %v1282 = vrot.slane %v1281, 1
  %v1283 = vadd.f32 %v1281, %v1282
  %v1284 = vmul.f32 %v1283, 0.001953125
  %v1285 = vadd.f32 %v1284, 1e-05
  %v1286 = vrsqrt.pop %v1285
  %v1287 = vmul.f32 %v1286, %v1085
  %v1288 = vlaneseq
  %v1289 = vshrl.u32 %v1288, 7
  %v1290 = vsub.s32 0, %v1289
  %v1291 = vrot.slane %v1287, %v1290
  %v1292 = vmul.f32 %v1182, %v1291
  %v1293 = vmul.f32 %v1183, %v1291
  %v1294 = vmul.f32 %v1184, %v1291
  %v1295 = vmul.f32 %v1185, %v1291
  %v1297 = vlaneseq
  %v1298 = vshrl.u32 %v1297, 7
  %v1299 = vsub.s32 0, %v1298
  %v1300 = vrot.slane %v1086, %v1299
  %v1302 = vadd.f32 %v1292, %v1300
  %v1303 = vadd.f32 %v1293, %v1300
  %v1304 = vadd.f32 %v1294, %v1300
  %v1305 = vadd.f32 %v1295, %v1300
  %v1306 = vadd.f32 %v1302, %v38
  %v1307 = vadd.f32 %v1303, %v39
  %v1308 = vadd.f32 %v1304, %v40
  %v1309 = vadd.f32 %v1305, %v41
  %v1310 = vmax.f32 %v1306, 0.0
  %v1311 = vmax.f32 %v1307, 0.0
  %v1312 = vmax.f32 %v1308, 0.0
  %v1313 = vmax.f32 %v1309, 0.0
  %1314 = vst [vmem:[%s10] sm:$0xff] %v1310
  %1315 = vst [vmem:[%s10 + $0x8] sm:$0xff] %v1311
  %1316 = vst [vmem:[%s10 + $0x10] sm:$0xff] %v1312
  %1317 = vst [vmem:[%s10 + $0x18] sm:$0xff] %v1313
  %1318 = vst [vmem:[%s11] sm:$0xff] %v1306
  %1319 = vst [vmem:[%s11 + $0x8] sm:$0xff] %v1307
  %1320 = vst [vmem:[%s11 + $0x10] sm:$0xff] %v1308
  %1321 = vst [vmem:[%s11 + $0x18] sm:$0xff] %v1309
  // Predicated region
  $region42: #{basic_block_forward.1} parent=0 // pred_check
    _
  $region43: #{basic_block_forward.1} parent=0 // pred_check_branch
    %1323 = sbr.rel (0) target = $region45
  $region44: #{basic_block_forward.1} parent=0 // pred_region
    _
  $region45: #{basic_block_forward.1} parent=0 // pred_fallthru
    _
  // Predicated region
  $region46: #{basic_block_forward.1} parent=0 // pred_check
    _
  $region47: #{basic_block_forward.1} parent=0 // pred_check_branch
    %1325 = sbr.rel (0) target = $region49
  $region48: #{basic_block_forward.1} parent=0 // pred_region
    _
  $region49: #{basic_block_forward.1} parent=0 // pred_fallthru
    _
  // Predicated region
  $region50: #{basic_block_forward.1} parent=0 // pred_check
    _
  $region51: #{basic_block_forward.1} parent=0 // pred_check_branch
    %1327 = sbr.rel (0) target = $region53
  $region52: #{basic_block_forward.1} parent=0 // pred_region
    _
  $region53: #{basic_block_forward.1} parent=0 // pred_fallthru
    _
  // Predicated region
  $region54: #{basic_block_forward.1} parent=0 // pred_check
    _
  $region55: #{basic_block_forward.1} parent=0 // pred_check_branch
    %1329 = sbr.rel (0) target = $region57
  $region56: #{basic_block_forward.1} parent=0 // pred_region
    _
  $region57: #{basic_block_forward.1} parent=0 // pred_fallthru
    _

</llo_original>
